<compile_context>
chip_gen: v7x
topology: tpu7x:2x2x1
jax: 0.10.0
libtpu: 0.0.40
codegen_flags: <defaults>
</compile_context>

<pallas_src>
import functools

import jax
import jax.numpy as jnp
from jax.experimental import pallas as pl
from jax.experimental.pallas import tpu as pltpu


def _round_up(n, m):
    return -(-n // m) * m


# ------------------------------ kernel ------------------------------------ #
def _downsample_kernel(x_ref, w_ref, b_ref, o_ref, *, f, th, wo, c_pad):
    # x_ref: (th, f, wo, f*c)  x_ref[t, fi, wi, fj*c+ci] = x[b, (hb*th+t)*f+fi, wi*f+fj, ci]
    # w_ref: (f, f*c, c_pad)   folded (proj + shortcut-mean + unshuffle-perm) weight
    # b_ref: (1, c_pad)
    # o_ref: (th, wo, c_pad)
    k = x_ref.shape[-1]                                    # = f * c

    def slab(fi):
        xs = x_ref[:, fi]                                  # ref-level static slice -> (th, wo, k)
        xs = xs.reshape(th * wo, k)                        # metadata-only when wo % 8 == 0
        return jnp.dot(xs, w_ref[fi], preferred_element_type=jnp.float32)

    # TODO(synk): for tiny f*c (<128) the f skinny dots under-use the 256-deep
    # MXU; a single K=f*f*c dot would need the gather we deliberately avoid.
    acc = slab(0)
    for fi in range(1, f):
        acc = acc + slab(fi)
    acc = acc + b_ref[...].astype(jnp.float32)             # broadcast (1, c_pad)
    o_ref[...] = acc.reshape(th, wo, c_pad).astype(o_ref.dtype)


# --------------------------- tiling heuristic ------------------------------ #
def _pick_th(b, ho, f, wo, c, c_pad, in_itemsize, out_itemsize,
             vmem_budget_bytes=40 * 1024 * 1024, min_grid_steps=8):
    """Largest th (output rows per grid step) whose padded VMEM footprint
    (2x double-buffered x tile + 2x output tile + single-buffered weight/bias)
    fits the budget, capped so the grid keeps >= min_grid_steps steps."""
    lane_in = _round_up(f * c, 128)
    sub_wo = _round_up(wo, 8)
    x_row = f * sub_wo * lane_in * in_itemsize             # x bytes per output row (padded)
    o_row = sub_wo * c_pad * out_itemsize
    w_bytes = f * _round_up(f * c, 8) * c_pad * in_itemsize  # single-buffered weight
    fixed = w_bytes + 8 * c_pad * in_itemsize                # + bias tile
    per_row = 2 * x_row + 2 * o_row                          # double-buffered x and out
    th_cap = max(1, (vmem_budget_bytes - fixed) // max(per_row, 1))
    # keep enough grid steps for 2-TC sharding + double-buffer overlap
    min_hb = max(1, -(-min_grid_steps // max(b, 1)))
    th_parallel = max(1, ho // min_hb)
    return int(max(1, min(th_cap, th_parallel, ho)))


# --------------------------- one-time weight folding ----------------------- #
def fold_downsample_params(weight, bias, *, in_channels, factor, shortcut,
                           param_dtype=None):
    """weight: (c_out, c*f*f) PyTorch Linear layout, K ordered (ci, fi, fj).
    Returns (w_fold (f, f*c, c_pad), bias_fold (1, c_pad)) with c_pad a
    multiple of 128 (lane-dense stores); extra columns are zero."""
    c, f = in_channels, factor
    c_out, k = weight.shape
    assert k == c * f * f
    dtype = weight.dtype if param_dtype is None else param_dtype

    w_eff = weight.astype(jnp.float32).T                   # (K, c_out)
    if shortcut:
        gs = k // c_out
        assert gs * c_out == k, "in_channels*factor**2 must divide by out_channels"
        m = (jnp.arange(k)[:, None] // gs == jnp.arange(c_out)[None, :])
        w_eff = w_eff + m.astype(jnp.float32) / gs         # group-mean as linear map

    c_pad = _round_up(c_out, 128)                          # lane-dense output
    w_eff = jnp.pad(w_eff, ((0, 0), (0, c_pad - c_out)))
    b_eff = jnp.pad(bias.astype(jnp.float32), (0, c_pad - c_out)).reshape(1, c_pad)

    # reorder K from (ci, fi, fj) into per-f_h slabs of (fj, ci): (f, f*c, c_pad)
    w_fold = w_eff.reshape(c, f, f, c_pad).transpose(1, 2, 0, 3).reshape(f, f * c, c_pad)
    return w_fold.astype(dtype), b_eff.astype(dtype)


# ------------------------------- apply ------------------------------------- #
@functools.partial(jax.jit, static_argnames=("factor", "c_out"))
def downsample_apply(x, w_fold, bias_fold, *, factor, c_out):
    b, h, w, c = x.shape
    f = factor
    assert h % f == 0 and w % f == 0, "spatial dims must be divisible by factor"
    ho, wo = h // f, w // f
    fk, k, c_pad = w_fold.shape
    assert fk == f and k == f * c

    # contiguous (metadata-only) regroup; the unshuffle permutation lives in w_fold
    xg = x.reshape(b, ho, f, wo, f * c)

    itemsize = jnp.dtype(x.dtype).itemsize
    th = _pick_th(b, ho, f, wo, c, c_pad, itemsize, itemsize)
    grid = (b, pl.cdiv(ho, th))

    kernel = functools.partial(_downsample_kernel, f=f, th=th, wo=wo, c_pad=c_pad)
    flops = 2 * b * ho * wo * (f * f * c) * c_pad
    bytes_accessed = (xg.size * itemsize
                      + w_fold.size * jnp.dtype(w_fold.dtype).itemsize
                      + b * ho * wo * c_pad * itemsize)

    out = pl.pallas_call(
        kernel,
        out_shape=jax.ShapeDtypeStruct((b, ho, wo, c_pad), x.dtype),
        grid_spec=pltpu.PrefetchScalarGridSpec(
            num_scalar_prefetch=0,
            grid=grid,
            in_specs=[
                pl.BlockSpec((None, th, f, wo, f * c),
                             lambda bi, hb: (bi, hb, 0, 0, 0)),
                # constant operands: single-buffered (reclaims VMEM for x tiles)
                pl.BlockSpec((f, f * c, c_pad), lambda bi, hb: (0, 0, 0),
                             pipeline_mode=pl.Buffered(1)),
                pl.BlockSpec((1, c_pad), lambda bi, hb: (0, 0),
                             pipeline_mode=pl.Buffered(1)),
            ],
            out_specs=pl.BlockSpec((None, th, wo, c_pad),
                                   lambda bi, hb: (bi, hb, 0, 0)),
        ),
        compiler_params=pltpu.CompilerParams(
            dimension_semantics=("parallel", "parallel"),
            vmem_limit_bytes=48 * 1024 * 1024,   # safe on v5e/v6e (128 MiB) and v7x (64 MiB)
        ),
        cost_estimate=pl.CostEstimate(flops=flops, transcendentals=0,
                                      bytes_accessed=bytes_accessed),
    )(xg, w_fold, bias_fold)
    return out[..., :c_out]                                 # drop lane padding


# ------------------------------ module ------------------------------------- #
class DownsampleBlock:
    """JAX/Pallas port of the PyTorch DownsampleBlock (PixelUnshuffle + Linear
    + optional group-mean shortcut), channels-last input (b, h, w, c)."""

    def __init__(self, in_channels, out_channels, shortcut=True, factor=2, *,
                 key, dtype=jnp.float32):
        self.factor = factor
        self.shortcut = shortcut
        self.out_channels = out_channels
        k = in_channels * factor ** 2
        self.group_size = k // out_channels
        kw, kb = jax.random.split(key)
        bound = 1.0 / (k ** 0.5)
        self.weight = jax.random.uniform(kw, (out_channels, k), dtype, -bound, bound)
        self.bias = jax.random.uniform(kb, (out_channels,), dtype, -bound, bound)
        # fold (unshuffle perm + shortcut mean + lane padding) once, off the fwd path
        self.w_fold, self.bias_fold = fold_downsample_params(
            self.weight, self.bias, in_channels=in_channels, factor=factor,
            shortcut=shortcut, param_dtype=dtype)

    def __call__(self, x):
        return downsample_apply(x, self.w_fold, self.bias_fold,
                                factor=self.factor, c_out=self.out_channels)


# ------------------------------ reference ---------------------------------- #
def _reference_downsample(x, weight, bias, *, factor, shortcut):
    b, h, w, c = x.shape
    f = factor
    y = x.reshape(b, h // f, f, w // f, f, c)
    y = jnp.transpose(y, (0, 1, 3, 5, 2, 4))
    u = y.reshape(b, h // f, w // f, c * f * f)            # PixelUnshuffle
    out = u @ weight.T + bias                              # proj
    if shortcut:
        c_out = weight.shape[0]
        gs = (c * f * f) // c_out
        s = u.reshape(b, h // f, w // f, c_out, gs).mean(axis=-1)
        out = out + s
    return out


if __name__ == "__main__":
    key = jax.random.PRNGKey(0)
    kx, kp = jax.random.split(key)

    b, h, w, c_in = 2, 16, 16, 4
    factor = 2
    c_out = 8
    x = jax.random.normal(kx, (b, h, w, c_in), dtype=jnp.float32)

    # shortcut=True path
    block = DownsampleBlock(c_in, c_out, shortcut=True, factor=factor, key=kp)
    out = jax.block_until_ready(block(x))
    ref = _reference_downsample(x, block.weight, block.bias,
                                factor=factor, shortcut=True)
    assert out.shape == (b, h // factor, w // factor, c_out), out.shape
    assert out.dtype == x.dtype
    assert jnp.allclose(out, ref, rtol=1e-5, atol=1e-5), "shortcut=True mismatch"

    # shortcut=False path
    block_ns = DownsampleBlock(c_in, c_out, shortcut=False, factor=factor, key=kp)
    out_ns = jax.block_until_ready(block_ns(x))
    ref_ns = _reference_downsample(x, block_ns.weight, block_ns.bias,
                                   factor=factor, shortcut=False)
    assert jnp.allclose(out_ns, ref_ns, rtol=1e-5, atol=1e-5), "shortcut=False mismatch"

    print("KERNEL_OK")
</pallas_src>

<mosaic_0001>
module attributes {stable_mosaic.version = 11 : i64} {
  func.func @_downsample_kernel(%arg0: i32, %arg1: i32, %arg2: memref<1x2x2x8x8xf32, #tpu.memory_space<vmem>>, %arg3: memref<2x8x128xf32, #tpu.memory_space<vmem>>, %arg4: memref<1x128xf32, #tpu.memory_space<vmem>>, %arg5: memref<1x2x8x128xf32, #tpu.memory_space<vmem>>) attributes {dimension_semantics = [#tpu.dimension_semantics<parallel>, #tpu.dimension_semantics<parallel>], iteration_bounds = array<i64: 2, 4>, scalar_prefetch = 0 : i64, scratch_operands = 0 : i64, tpu.core_type = #tpu.core_type<tc>, window_params = [{transform_indices = @transform_0, window_bounds = array<i64: 1, 2, 2, 8, 8>}, {pipeline_mode = #tpu.pipeline_mode<synchronous>, transform_indices = @transform_1, window_bounds = array<i64: 2, 8, 128>}, {pipeline_mode = #tpu.pipeline_mode<synchronous>, transform_indices = @transform_2, window_bounds = array<i64: 1, 128>}, {transform_indices = @transform_3, window_bounds = array<i64: 1, 2, 8, 128>}]} {
    %c0 = arith.constant 0 : index
    %c0_0 = arith.constant 0 : index
    %c0_1 = arith.constant 0 : index
    %c0_2 = arith.constant 0 : index
    %c0_3 = arith.constant 0 : index
    %0 = vector.load %arg2[%c0, %c0_0, %c0_1, %c0_2, %c0_3] : memref<1x2x2x8x8xf32, #tpu.memory_space<vmem>>, vector<1x2x1x8x8xf32>
    %1 = vector.shape_cast %0 : vector<1x2x1x8x8xf32> to vector<2x8x8xf32>
    %2 = vector.shape_cast %1 : vector<2x8x8xf32> to vector<16x8xf32>
    %c0_4 = arith.constant 0 : index
    %c0_5 = arith.constant 0 : index
    %c0_6 = arith.constant 0 : index
    %3 = vector.load %arg3[%c0_4, %c0_5, %c0_6] : memref<2x8x128xf32, #tpu.memory_space<vmem>>, vector<1x8x128xf32>
    %4 = vector.shape_cast %3 : vector<1x8x128xf32> to vector<8x128xf32>
    %cst = arith.constant dense<0.000000e+00> : vector<16x128xf32>
    %5 = tpu.matmul %2, %4, %cst {dimension_numbers = #tpu.dot_dimension_numbers<[1], [0], [0], [1], [0, 0, 1, 1], [], []>} : vector<16x8xf32>, vector<8x128xf32>, vector<16x128xf32> -> vector<16x128xf32>
    %c0_7 = arith.constant 0 : index
    %c0_8 = arith.constant 0 : index
    %c1 = arith.constant 1 : index
    %c0_9 = arith.constant 0 : index
    %c0_10 = arith.constant 0 : index
    %6 = vector.load %arg2[%c0_7, %c0_8, %c1, %c0_9, %c0_10] : memref<1x2x2x8x8xf32, #tpu.memory_space<vmem>>, vector<1x2x1x8x8xf32>
    %7 = vector.shape_cast %6 : vector<1x2x1x8x8xf32> to vector<2x8x8xf32>
    %8 = vector.shape_cast %7 : vector<2x8x8xf32> to vector<16x8xf32>
    %c1_11 = arith.constant 1 : index
    %c0_12 = arith.constant 0 : index
    %c0_13 = arith.constant 0 : index
    %9 = vector.load %arg3[%c1_11, %c0_12, %c0_13] : memref<2x8x128xf32, #tpu.memory_space<vmem>>, vector<1x8x128xf32>
    %10 = vector.shape_cast %9 : vector<1x8x128xf32> to vector<8x128xf32>
    %cst_14 = arith.constant dense<0.000000e+00> : vector<16x128xf32>
    %11 = tpu.matmul %8, %10, %cst_14 {dimension_numbers = #tpu.dot_dimension_numbers<[1], [0], [0], [1], [0, 0, 1, 1], [], []>} : vector<16x8xf32>, vector<8x128xf32>, vector<16x128xf32> -> vector<16x128xf32>
    %12 = arith.addf %5, %11 : vector<16x128xf32>
    %c0_15 = arith.constant 0 : index
    %c0_16 = arith.constant 0 : index
    %13 = vector.load %arg4[%c0_15, %c0_16] : memref<1x128xf32, #tpu.memory_space<vmem>>, vector<1x128xf32>
    %14 = vector.broadcast %13 : vector<1x128xf32> to vector<16x128xf32>
    %15 = arith.addf %12, %14 : vector<16x128xf32>
    %16 = vector.shape_cast %15 : vector<16x128xf32> to vector<2x8x128xf32>
    %c0_17 = arith.constant 0 : index
    %c0_18 = arith.constant 0 : index
    %c0_19 = arith.constant 0 : index
    %c0_20 = arith.constant 0 : index
    %17 = vector.load %arg5[%c0_17, %c0_18, %c0_19, %c0_20] : memref<1x2x8x128xf32, #tpu.memory_space<vmem>>, vector<1x2x8x128xf32>
    %18 = vector.shape_cast %17 : vector<1x2x8x128xf32> to vector<2x8x128xf32>
    %19 = vector.shape_cast %16 : vector<2x8x128xf32> to vector<1x2x8x128xf32>
    tpu.vector_store %arg5[%c0_17, %c0_18, %c0_19, %c0_20], %19 {strides = array<i32>} : memref<1x2x8x128xf32, #tpu.memory_space<vmem>>, vector<1x2x8x128xf32>,
    return
  }
  func.func @transform_0(%arg0: i32, %arg1: i32) -> (i32, i32, i32, i32, i32) {
    %c0_i32 = arith.constant 0 : i32
    %c0_i32_0 = arith.constant 0 : i32
    %c0_i32_1 = arith.constant 0 : i32
    %c0_i32_2 = arith.constant 0 : i32
    return %arg0, %arg1, %c0_i32, %c0_i32_0, %c0_i32_1 : i32, i32, i32, i32, i32
  }
  func.func @transform_1(%arg0: i32, %arg1: i32) -> (i32, i32, i32) {
    %c0_i32 = arith.constant 0 : i32
    %c0_i32_0 = arith.constant 0 : i32
    %c0_i32_1 = arith.constant 0 : i32
    %c0_i32_2 = arith.constant 0 : i32
    return %c0_i32, %c0_i32_0, %c0_i32_1 : i32, i32, i32
  }
  func.func @transform_2(%arg0: i32, %arg1: i32) -> (i32, i32) {
    %c0_i32 = arith.constant 0 : i32
    %c0_i32_0 = arith.constant 0 : i32
    %c0_i32_1 = arith.constant 0 : i32
    return %c0_i32, %c0_i32_0 : i32, i32
  }
  func.func @transform_3(%arg0: i32, %arg1: i32) -> (i32, i32, i32, i32) {
    %c0_i32 = arith.constant 0 : i32
    %c0_i32_0 = arith.constant 0 : i32
    %c0_i32_1 = arith.constant 0 : i32
    return %arg0, %arg1, %c0_i32, %c0_i32_0 : i32, i32, i32, i32
  }
}

</mosaic_0001>

<llo_original>
// kernel: downsample_apply.1
$region0: #{downsample_apply.1}
  #allocation0 [shape = 'u32[]', space=smem, size = 0x4, offset = 0x4, fixed_abs, tag = 'smem constant byte address 0x4 - core index']
  #allocation1 [shape = 'u32[144,128]{1,0:T(1,128)}', space=vmem, size = 0x12000, scoped, tag = 'internal scratch']
  %s0 = inlined_call_operand.vmem [shape: f32[2,8,2,8,8], index: 0, kind: input, shape index: {}]
  %s1 = inlined_call_operand.vmem [shape: f32[2,8,128], index: 1, kind: input, shape index: {}]
  %s2 = inlined_call_operand.vmem [shape: f32[1,128], index: 2, kind: input, shape index: {}]
  %s3 = inlined_call_operand.hbm [shape: f32[2,8,8,128], index: 3, kind: output, shape index: {}]
  %s4 = sld [smem:[#allocation0]]
  $region45: #{downsample_apply.1} parent=0
    _
  %s6 = ssub.s32 1, %s4
  %s7 = scalar_select 0, %s6, %s4
  $region1: #{downsample_apply.1} parent=0
    #allocation2 [shape = 'u8[16384]{0}', space=vmem, size = 0x4000, scoped, tag = 'output window, operand 0']
    #allocation3 [shape = 's32[2]{0}', space=sflag, size = 0x8, scoped, tag = 'scoped memory for downsample_apply.1']
    %8 = vsyncpa [#allocation3], 0
    %s9 = scalar_lea.sflag [#allocation3], 1
    %10 = vsyncpa %s9, 0
    loop: start=0, step=1, limit=10
    $region2: #{downsample_apply.1} parent=1 // loop_pre_header
      _
    $region3: #{downsample_apply.1} parent=1 // loop_header
      %s12 = sphi 0, %s16
      %p13 = scmp.ge.s32.totalorder %s12, 10
      %s19 = sphi 0, %s31
      %s20 = sphi 0, %s27
      %s21 = sphi 0, %s19
      %s22 = sphi 0, %s20
      %s23 = sphi 0, %s21
      %s24 = sphi 0, %s22
      %s36 = sphi 0, %s38
      %s39 = sphi 0, %s36
      %s40 = sphi 0, %s39
      %s56 = sphi 0, %s40
      %s60 = sphi 0, %s60
      %s62 = sphi 0, %s60
      %s63 = sphi 0, %s62
      %s77 = sphi 0, %s63
      %s81 = sphi 0, %s81
      %s83 = sphi 0, %s81
      %s84 = sphi 0, %s83
      %s98 = sphi 0, %s84
      %s106 = sphi 0, %s108
      %s109 = sphi 0, %s106
      %s110 = sphi 0, %s109
      %s126 = sphi 0, %s110
    $region4: #{downsample_apply.1} parent=1 // loop_header_branch
      %15 = sbr.rel (%p13) target = $region8
    $region5: #{downsample_apply.1} parent=1 // loop_body
      %s17 = ssub.s32 %s12, 1
      %s18 = ssub.s32 %s12, 2
      %s25 = sadd.s32 1, %s20
      %p26 = scmp.ge.s32.totalorder %s25, 4
      %s27 = scalar_select %p26, 0, %s25
      %s28 = sadd.s32 1, %s19
      %s29 = scalar_select %p26, %s28, %s19
      %p30 = scmp.ge.s32.totalorder %s29, 2
      %s31 = scalar_select %p30, 0, %s29
      %s32 = ssub.s32 %s19, %s31
      %s33 = ssub.s32 %s20, %s27
      %s34 = sor.u32 %s32, %s33
      %p35 = scmp.eq.s32.totalorder %s34, 0
      %s37 = sadd.s32 %s36, 1
      %s38 = scalar_select %p35, %s36, %s37
      %p41 = pneg %p35
      %p42 = scmp.eq.s32.totalorder %s12, 7
      %p43 = por %p41, %p42
      %p44 = scmp.ne.s32.totalorder %s36, %s39
      %p45 = scmp.eq.s32.totalorder %s12, 0
      %p46 = por %p44, %p45
      %p47 = scmp.ne.s32.totalorder %s36, %s39
      %p48 = scmp.eq.s32.totalorder %s17, 7
      %p49 = por %p47, %p48
      %p50 = scmp.ne.s32.totalorder %s39, %s40
      %p51 = scmp.eq.s32.totalorder %s17, 0
      %p52 = por %p50, %p51
      %p53 = scmp.ne.s32.totalorder %s39, %s40
      %p54 = scmp.eq.s32.totalorder %s18, 7
      %p55 = por %p53, %p54
      %p57 = scmp.ne.s32.totalorder %s40, %s56
      %p58 = scmp.eq.s32.totalorder %s18, 0
      %p59 = por %p57, %p58
      %s61 = sadd.s32 %s60, 1
      %p64 = scmp.eq.s32.totalorder %s12, 7
      %p65 = scmp.ne.s32.totalorder %s60, %s62
      %p66 = scmp.eq.s32.totalorder %s12, 0
      %p67 = por %p65, %p66
      %p68 = scmp.ne.s32.totalorder %s60, %s62
      %p69 = scmp.eq.s32.totalorder %s17, 7
      %p70 = por %p68, %p69
      %p71 = scmp.ne.s32.totalorder %s62, %s63
      %p72 = scmp.eq.s32.totalorder %s17, 0
      %p73 = por %p71, %p72
      %p74 = scmp.ne.s32.totalorder %s62, %s63
      %p75 = scmp.eq.s32.totalorder %s18, 7
      %p76 = por %p74, %p75
      %p78 = scmp.ne.s32.totalorder %s63, %s77
      %p79 = scmp.eq.s32.totalorder %s18, 0
      %p80 = por %p78, %p79
      %s82 = sadd.s32 %s81, 1
      %p85 = scmp.eq.s32.totalorder %s12, 7
      %p86 = scmp.ne.s32.totalorder %s81, %s83
      %p87 = scmp.eq.s32.totalorder %s12, 0
      %p88 = por %p86, %p87
      %p89 = scmp.ne.s32.totalorder %s81, %s83
      %p90 = scmp.eq.s32.totalorder %s17, 7
      %p91 = por %p89, %p90
      %p92 = scmp.ne.s32.totalorder %s83, %s84
      %p93 = scmp.eq.s32.totalorder %s17, 0
      %p94 = por %p92, %p93
      %p95 = scmp.ne.s32.totalorder %s83, %s84
      %p96 = scmp.eq.s32.totalorder %s18, 7
      %p97 = por %p95, %p96
      %p99 = scmp.ne.s32.totalorder %s84, %s98
      %p100 = scmp.eq.s32.totalorder %s18, 0
      %p101 = por %p99, %p100
      %s102 = ssub.s32 %s19, %s31
      %s103 = ssub.s32 %s20, %s27
      %s104 = sor.u32 %s102, %s103
      %p105 = scmp.eq.s32.totalorder %s104, 0
      %s107 = sadd.s32 %s106, 1
      %s108 = scalar_select %p105, %s106, %s107
      %p111 = pneg %p105
      %p112 = scmp.eq.s32.totalorder %s12, 7
      %p113 = por %p111, %p112
      %p114 = scmp.ne.s32.totalorder %s106, %s109
      %p115 = scmp.eq.s32.totalorder %s12, 0
      %p116 = por %p114, %p115
      %p117 = scmp.ne.s32.totalorder %s106, %s109
      %p118 = scmp.eq.s32.totalorder %s17, 7
      %p119 = por %p117, %p118
      %p120 = scmp.ne.s32.totalorder %s109, %s110
      %p121 = scmp.eq.s32.totalorder %s17, 0
      %p122 = por %p120, %p121
      %p123 = scmp.ne.s32.totalorder %s109, %s110
      %p124 = scmp.eq.s32.totalorder %s18, 7
      %p125 = por %p123, %p124
      %p127 = scmp.ne.s32.totalorder %s110, %s126
      %p128 = scmp.eq.s32.totalorder %s18, 0
      %p129 = por %p127, %p128
      %p130 = scmp.le.s32.totalorder 1, %s12
      %p131 = scmp.lt.s32.totalorder %s12, 9
      %p132 = pnand %p130, %p131
      %p133 = pneg %p132
      // Predicated region
      $region9: #{downsample_apply.1} parent=5 // pred_check
        _
      $region10: #{downsample_apply.1} parent=5 // pred_check_branch
        %135 = sbr.rel (%p132) target = $region12
      $region11: #{downsample_apply.1} parent=5 // pred_region
        %s136 = ssub.s32 %s12, 1
        // Predicated region
        $region13: #{downsample_apply.1} parent=11 // pred_check
          %p137 = pneg %p73
        $region14: #{downsample_apply.1} parent=11 // pred_check_branch
          %139 = sbr.rel (%p137) target = $region16
        $region15: #{downsample_apply.1} parent=11 // pred_region
          _
        $region16: #{downsample_apply.1} parent=11 // pred_fallthru
          _
        // Predicated region
        $region17: #{downsample_apply.1} parent=11 // pred_check
          %p140 = pneg %p94
        $region18: #{downsample_apply.1} parent=11 // pred_check_branch
          %142 = sbr.rel (%p140) target = $region20
        $region19: #{downsample_apply.1} parent=11 // pred_region
          _
        $region20: #{downsample_apply.1} parent=11 // pred_fallthru
          _
      $region12: #{downsample_apply.1} parent=5 // pred_fallthru
        _
      %p143 = scmp.lt.s32.totalorder %s12, 8
      // Predicated region
      $region21: #{downsample_apply.1} parent=5 // pred_check
        %p144 = pneg %p143
      $region22: #{downsample_apply.1} parent=5 // pred_check_branch
        %146 = sbr.rel (%p144) target = $region24
      $region23: #{downsample_apply.1} parent=5 // pred_region
        // Predicated region
        $region25: #{downsample_apply.1} parent=23 // pred_check
          %p147 = pneg %p46
        $region26: #{downsample_apply.1} parent=23 // pred_check_branch
          %149 = sbr.rel (%p147) target = $region28
        $region27: #{downsample_apply.1} parent=23 // pred_region
          %s150 = smul.u32 2, %s20
          %p151 = scmp.lt.s32.totalorder %s19, 1
          %s152 = scalar_select %p151, %s19, 1
          %p153 = scmp.lt.s32.totalorder %s150, 7
          %s154 = scalar_select %p153, %s150, 7
          %s155 = smul.addr %s154, 2
          %s156 = smul.addr %s152, 16
          %s157 = sadd.s32 %s155, %s156
          %s158 = smul.addr %s157, 8
          %s159 = scalar_lea.vmem %s0, %s158
          %s160 = smul.u32 2, %s20
        $region28: #{downsample_apply.1} parent=23 // pred_fallthru
          _
      $region24: #{downsample_apply.1} parent=5 // pred_fallthru
        _
      %p161 = scmp.le.s32.totalorder 1, %s12
      %p162 = scmp.lt.s32.totalorder %s12, 9
      %p163 = pnand %p161, %p162
      %p164 = pneg %p163
      // Predicated region
      $region29: #{downsample_apply.1} parent=5 // pred_check
        _
      $region30: #{downsample_apply.1} parent=5 // pred_check_branch
        %166 = sbr.rel (%p163) target = $region32
      $region31: #{downsample_apply.1} parent=5 // pred_region
        %s167 = ssub.s32 %s12, 1
        %s168 = smul.u32 2, %s22
        %p169 = scmp.lt.s32.totalorder %s21, 1
        %s170 = scalar_select %p169, %s21, 1
        %p171 = scmp.lt.s32.totalorder %s168, 7
        %s172 = scalar_select %p171, %s168, 7
        %s173 = smul.addr %s172, 2
        %s174 = smul.addr %s170, 16
        %s175 = sadd.s32 %s173, %s174
        %s176 = smul.addr %s175, 8
        %s177 = scalar_lea.vmem %s0, %s176
        %p178 = pneg %p52
        %p179 = pneg %p49
        %p180 = pneg %p73
        %p181 = pneg %p70
        %p182 = pneg %p94
        %p183 = pneg %p91
        %p184 = pneg %p122
        %p185 = pneg %p119
        %s186 = sand.u32 %s109, 1
        %s187 = scalar_lea.sflag [#allocation3], %s186
        %s188 = sand.u32 %s109, 1
        %s189 = smul.addr %s188, 16
        %s190 = scalar_lea.vmem [#allocation2], %s189
        %s191 = smul.u32 2, %s22
        %p192 = scmp.lt.s32.totalorder %s21, 1
        %s193 = scalar_select %p192, %s21, 1
        %p194 = scmp.lt.s32.totalorder %s191, 7
        %s195 = scalar_select %p194, %s191, 7
        %s196 = smul.addr %s195, 2
        %s197 = smul.addr %s193, 16
        %s198 = sadd.s32 %s196, %s197
        %s199 = smul.addr %s198, 8
        %s200 = scalar_lea.vmem %s0, %s199
        %s201 = smul.u32 2, %s22
        %s202 = smul.u32 2, %s22
        %v203 = vld [vmem:[%s200] sm:$0xff]
        %v204 = vld [vmem:[%s200 + $0x10] sm:$0xff]
        %v205 = vld [vmem:[%s1] sm:$0xff]
        %s206 = scalar_lea.vmem %s200, 8
        %v207 = vld [vmem:[%s206] sm:$0xff]
        %v208 = vld [vmem:[%s206 + $0x10] sm:$0xff]
        %s209 = scalar_lea.vmem %s1, 8
        %v210 = vld [vmem:[%s209] sm:$0xff]
        %vm211 = vcmask 64512
        %v213 = vsel %vm211, %v207, 0
        %v216 = vsel %vm211, %v208, 0
        %218 = vmatprep.subr.mxu0 0.0
        %219 = vmatpush1.msra.mxu0 %v210
        %220 = vmatprep.subr.mxu0 0.0
        %221 = vmatpush1.msra.mxu0 0.0
        %222 = vmatprep.subr.mxu0 0.0
        %223 = vmatpush1.msra.mxu0 0.0
        %224 = vmatprep.subr.mxu0 0.0
        %225 = vmatpush1.msra.mxu0 0.0
        %226 = vmatprep.subr.mxu0 0.0
        %227 = vmatpush1.msra.mxu0 0.0
        %228 = vmatprep.subr.mxu0 0.0
        %229 = vmatpush1.msra.mxu0 0.0
        %230 = vmatprep.subr.mxu0 0.0
        %231 = vmatpush1.msra.mxu0 0.0
        %232 = vmatprep.subr.mxu0 0.0
        %233 = vmatpush1.msra.mxu0 0.0
        %234 = vmatprep.subr.mxu0 0.0
        %235 = vmatpush1.msra.mxu0 0.0
        %236 = vmatprep.subr.mxu0 0.0
        %237 = vmatpush1.msra.mxu0 0.0
        %238 = vmatprep.subr.mxu0 0.0
        %239 = vmatpush1.msra.mxu0 0.0
        %240 = vmatprep.subr.mxu0 0.0
        %241 = vmatpush1.msra.mxu0 0.0
        %242 = vmatprep.subr.mxu0 0.0
        %243 = vmatpush1.msra.mxu0 0.0
        %244 = vmatprep.subr.mxu0 0.0
        %245 = vmatpush1.msra.mxu0 0.0
        %246 = vmatprep.subr.mxu0 0.0
        %247 = vmatpush1.msra.mxu0 0.0
        %248 = vmatprep.subr.mxu0 0.0
        %249 = vmatpush1.msra.mxu0 0.0
        %250 = vmatprep.subr.mxu0 0.0
        %251 = vmatpush1.msra.mxu0 0.0
        %252 = vmatprep.subr.mxu0 0.0
        %253 = vmatpush1.msra.mxu0 0.0
        %254 = vmatprep.subr.mxu0 0.0
        %255 = vmatpush1.msra.mxu0 0.0
        %256 = vmatprep.subr.mxu0 0.0
        %257 = vmatpush1.msra.mxu0 0.0
        %258 = vmatprep.subr.mxu0 0.0
        %259 = vmatpush1.msra.mxu0 0.0
        %260 = vmatprep.subr.mxu0 0.0
        %261 = vmatpush1.msra.mxu0 0.0
        %262 = vmatprep.subr.mxu0 0.0
        %263 = vmatpush1.msra.mxu0 0.0
        %264 = vmatprep.subr.mxu0 0.0
        %265 = vmatpush1.msra.mxu0 0.0
        %266 = vmatprep.subr.mxu0 0.0
        %267 = vmatpush1.msra.mxu0 0.0
        %268 = vmatprep.subr.mxu0 0.0
        %269 = vmatpush1.msra.mxu0 0.0
        %270 = vmatprep.subr.mxu0 0.0
        %271 = vmatpush1.msra.mxu0 0.0
        %272 = vmatprep.subr.mxu0 0.0
        %273 = vmatpush1.msra.mxu0 0.0
        %274 = vmatprep.subr.mxu0 0.0
        %275 = vmatpush1.msra.mxu0 0.0
        %276 = vmatprep.subr.mxu0 0.0
        %277 = vmatpush1.msra.mxu0 0.0
        %278 = vmatprep.subr.mxu0 0.0
        %279 = vmatpush1.msra.mxu0 0.0
        %280 = vmatprep.subr.mxu0 0.0
        %281 = vmatpush1.msra.mxu0 0.0
        %282 = vmatprep.mubr.f32.mxu0 0.0
        %283 = vmatmul.mubr.f32.gmra.mrb[0].mxu0 %v213
        %v284 = vpop.f32.mrb[0].mxu0
        %v285 = vadd.f32 0.0, %v284
        %v286 = vpop.f32.mrb[0].mxu0
        %287 = vmatprep.mubr.f32.mxu0 0.0
        %288 = vmatmul.mubr.f32.gmra.mrb[0].mxu0 %v216
        %v289 = vpop.f32.mrb[0].mxu0
        %v290 = vadd.f32 0.0, %v289
        %v291 = vpop.f32.mrb[0].mxu0
        %292 = vdwg.mxu0
        %v294 = vsel %vm211, %v203, 0
        %v297 = vsel %vm211, %v204, 0
        %299 = vmatprep.subr.mxu0 0.0
        %300 = vmatpush1.msra.mxu0 %v205
        %301 = vmatprep.subr.mxu0 0.0
        %302 = vmatpush1.msra.mxu0 0.0
        %303 = vmatprep.subr.mxu0 0.0
        %304 = vmatpush1.msra.mxu0 0.0
        %305 = vmatprep.subr.mxu0 0.0
        %306 = vmatpush1.msra.mxu0 0.0
        %307 = vmatprep.subr.mxu0 0.0
        %308 = vmatpush1.msra.mxu0 0.0
        %309 = vmatprep.subr.mxu0 0.0
        %310 = vmatpush1.msra.mxu0 0.0
        %311 = vmatprep.subr.mxu0 0.0
        %312 = vmatpush1.msra.mxu0 0.0
        %313 = vmatprep.subr.mxu0 0.0
        %314 = vmatpush1.msra.mxu0 0.0
        %315 = vmatprep.subr.mxu0 0.0
        %316 = vmatpush1.msra.mxu0 0.0
        %317 = vmatprep.subr.mxu0 0.0
        %318 = vmatpush1.msra.mxu0 0.0
        %319 = vmatprep.subr.mxu0 0.0
        %320 = vmatpush1.msra.mxu0 0.0
        %321 = vmatprep.subr.mxu0 0.0
        %322 = vmatpush1.msra.mxu0 0.0
        %323 = vmatprep.subr.mxu0 0.0
        %324 = vmatpush1.msra.mxu0 0.0
        %325 = vmatprep.subr.mxu0 0.0
        %326 = vmatpush1.msra.mxu0 0.0
        %327 = vmatprep.subr.mxu0 0.0
        %328 = vmatpush1.msra.mxu0 0.0
        %329 = vmatprep.subr.mxu0 0.0
        %330 = vmatpush1.msra.mxu0 0.0
        %331 = vmatprep.subr.mxu0 0.0
        %332 = vmatpush1.msra.mxu0 0.0
        %333 = vmatprep.subr.mxu0 0.0
        %334 = vmatpush1.msra.mxu0 0.0
        %335 = vmatprep.subr.mxu0 0.0
        %336 = vmatpush1.msra.mxu0 0.0
        %337 = vmatprep.subr.mxu0 0.0
        %338 = vmatpush1.msra.mxu0 0.0
        %339 = vmatprep.subr.mxu0 0.0
        %340 = vmatpush1.msra.mxu0 0.0
        %341 = vmatprep.subr.mxu0 0.0
        %342 = vmatpush1.msra.mxu0 0.0
        %343 = vmatprep.subr.mxu0 0.0
        %344 = vmatpush1.msra.mxu0 0.0
        %345 = vmatprep.subr.mxu0 0.0
        %346 = vmatpush1.msra.mxu0 0.0
        %347 = vmatprep.subr.mxu0 0.0
        %348 = vmatpush1.msra.mxu0 0.0
        %349 = vmatprep.subr.mxu0 0.0
        %350 = vmatpush1.msra.mxu0 0.0
        %351 = vmatprep.subr.mxu0 0.0
        %352 = vmatpush1.msra.mxu0 0.0
        %353 = vmatprep.subr.mxu0 0.0
        %354 = vmatpush1.msra.mxu0 0.0
        %355 = vmatprep.subr.mxu0 0.0
        %356 = vmatpush1.msra.mxu0 0.0
        %357 = vmatprep.subr.mxu0 0.0
        %358 = vmatpush1.msra.mxu0 0.0
        %359 = vmatprep.subr.mxu0 0.0
        %360 = vmatpush1.msra.mxu0 0.0
        %361 = vmatprep.subr.mxu0 0.0
        %362 = vmatpush1.msra.mxu0 0.0
        %363 = vmatprep.mubr.f32.mxu0 0.0
        %364 = vmatmul.mubr.f32.gmra.mrb[0].mxu0 %v294
        %v365 = vpop.f32.mrb[0].mxu0
        %v366 = vadd.f32 %v285, %v365
        %v367 = vpop.f32.mrb[0].mxu0
        %368 = vmatprep.mubr.f32.mxu0 0.0
        %369 = vmatmul.mubr.f32.gmra.mrb[0].mxu0 %v297
        %v370 = vpop.f32.mrb[0].mxu0
        %v371 = vadd.f32 %v290, %v370
        %v372 = vpop.f32.mrb[0].mxu0
        %373 = vdwg.mxu0
        %v374 = vld [vmem:[%s2] sm:$0x1]
        %v376 = vlaneseq
        %v377 = vshrl.u32 %v376, 7
        %v378 = vsub.s32 0, %v377
        %v379 = vrot.slane %v374, %v378
        %v381 = vadd.f32 %v366, %v379
        %v382 = vadd.f32 %v371, %v379
        %383 = vst [vmem:[%s190] sm:$0xff] %v381
        %384 = vst [vmem:[%s190 + $0x8] sm:$0xff] %v382
        %s385 = sand.u32 %s109, 1
        %s386 = scalar_lea.sflag [#allocation3], %s385
        %s387 = sand.u32 %s109, 1
        %s388 = smul.addr %s387, 16
        %s389 = scalar_lea.vmem [#allocation2], %s388
        // Predicated region
        $region33: #{downsample_apply.1} parent=31 // pred_check
          %p390 = pneg %p119
        $region34: #{downsample_apply.1} parent=31 // pred_check_branch
          %392 = sbr.rel (%p390) target = $region36
        $region35: #{downsample_apply.1} parent=31 // pred_region
          %s393 = smul.u32 2, %s22
          %s395 = ssub.s32 256, 256
          %396 = vsyncadd %s386, %s395
          %s397 = smul.addr %s21, 8
          %s398 = sadd.s32 %s393, %s397
          %s399 = smul.addr %s398, 128
          %s400 = scalar_lea.hbm %s3, %s399
          %s401 = sshll.u32 %s389, 4
          %s402 = int_to_ptr.vmem [resolvable:$true] %s401
          %407 = dma.vmem_to_hbm [thread:$0]  %s402, 256, %s400, %s386, 128, 128, 8
        $region36: #{downsample_apply.1} parent=31 // pred_fallthru
          _
      $region32: #{downsample_apply.1} parent=5 // pred_fallthru
        _
      %p408 = scmp.le.s32.totalorder 2, %s12
      // Predicated region
      $region37: #{downsample_apply.1} parent=5 // pred_check
        %p409 = pneg %p408
      $region38: #{downsample_apply.1} parent=5 // pred_check_branch
        %411 = sbr.rel (%p409) target = $region40
      $region39: #{downsample_apply.1} parent=5 // pred_region
        %s412 = ssub.s32 %s12, 2
        // Predicated region
        $region41: #{downsample_apply.1} parent=39 // pred_check
          %p413 = pneg %p125
        $region42: #{downsample_apply.1} parent=39 // pred_check_branch
          %415 = sbr.rel (%p413) target = $region44
        $region43: #{downsample_apply.1} parent=39 // pred_region
          %s416 = sand.u32 %s110, 1
          %s417 = scalar_lea.sflag [#allocation3], %s416
          %s418 = sand.u32 %s110, 1
          %s419 = smul.addr %s418, 16
          %s420 = scalar_lea.vmem [#allocation2], %s419
          %421 = dma.done %s417, 256
        $region44: #{downsample_apply.1} parent=39 // pred_fallthru
          _
      $region40: #{downsample_apply.1} parent=5 // pred_fallthru
        _
    $region6: #{downsample_apply.1} parent=1 // loop_footer
      %s16 = sadd.s32 1, %s12
    $region7: #{downsample_apply.1} parent=1 // loop_footer_branch
      %11 = sbr.rel target = $region3
    $region8: #{downsample_apply.1} parent=1 // loop_exit
      _
    %422 = vsyncpa [#allocation3], 1
    %s423 = scalar_lea.sflag [#allocation3], 1
    %424 = vsyncpa %s423, 1

</llo_original>
